<compile_context>
chip_gen: v7x
topology: tpu7x:2x2x1
jax: 0.10.0
libtpu: 0.0.40
codegen_flags: <defaults>
</compile_context>

<pallas_src>
import functools

import jax
import jax.numpy as jnp
from jax.experimental import pallas as pl
from jax.experimental.pallas import tpu as pltpu


def _round_up(x, m):
    return ((x + m - 1) // m) * m


def _gelu_tanh(x):
    # tanh-approx GELU:  0.5*x*(1 + tanh(sqrt(2/pi)*(x + 0.044715*x^3)))
    return 0.5 * x * (1.0 + jnp.tanh(0.7978845608028654 * (x + 0.044715 * x * x * x)))


# ---------------------------------------------------------------------------
# Fused kernel
# ---------------------------------------------------------------------------
def _fused_mlp_kernel(x_ref, w_ref, b_ref, o_ref, act_ref, *, num_layers):
    """One grid step = one (batch_tile, layer) pair.

    x_ref  : (TB, P)  packed [xr | xi] input tile (only consumed at layer 0)
    w_ref  : (1, P, P) packed block weight of the current layer
    b_ref  : (1, 1, P) packed bias of the current layer (f32)
    o_ref  : (TB, P)  packed output tile (written at the last layer only)
    act_ref: (TB, P)  f32 VMEM scratch carrying activations across layers
    """
    layer = pl.program_id(1)

    @pl.when(layer == 0)
    def _load_input():
        act_ref[...] = x_ref[...]

    a = act_ref[...]
    w = w_ref[0]
    if w.dtype != jnp.float32:       # bf16 MXU path: cast activations down,
        a = a.astype(w.dtype)        # accumulate in f32 (preferred_element_type)

    y = jnp.dot(a, w, preferred_element_type=jnp.float32) + b_ref[0]

    @pl.when(layer < num_layers - 1)
    def _hidden():
        # split complex GELU on the packed [yr | yi] plane, computed in f32
        act_ref[...] = _gelu_tanh(y)

    @pl.when(layer == num_layers - 1)
    def _final():
        o_ref[...] = y.astype(o_ref.dtype)


def fused_deep_mlp_pallas(x_packed, w_stack, b_stack, *, num_layers, block_b):
    """x_packed: (Bp, P) f32; w_stack: (L, P, P); b_stack: (L, 1, P) f32."""
    Bp, P = x_packed.shape
    assert Bp % block_b == 0
    grid = (Bp // block_b, num_layers)

    # VMEM budget estimate (double-buffered weights/bias/io + act scratch).
    w_item = jnp.dtype(w_stack.dtype).itemsize
    vmem_est = (2 * (P * P + P) * w_item          # weight + bias (2 buffers)
                + 2 * 2 * block_b * P * 4         # x and out (2 buffers each)
                + block_b * P * 4)                # activation scratch
    cp_kwargs = dict(dimension_semantics=("parallel", "arbitrary"))
    if vmem_est > 12 * 1024 * 1024:
        # lift the scoped-VMEM default, stay under v7x's 64 MiB physical
        cp_kwargs["vmem_limit_bytes"] = int(min(2 * vmem_est, 60 * 1024 * 1024))

    kernel = functools.partial(_fused_mlp_kernel, num_layers=num_layers)

    return pl.pallas_call(
        kernel,
        out_shape=jax.ShapeDtypeStruct((Bp, P), jnp.float32),
        grid_spec=pltpu.PrefetchScalarGridSpec(
            num_scalar_prefetch=0,
            grid=grid,
            in_specs=[
                pl.BlockSpec((block_b, P), lambda b, l: (b, 0)),   # x (re-used over l)
                pl.BlockSpec((1, P, P), lambda b, l: (l, 0, 0)),   # layer weights
                pl.BlockSpec((1, 1, P), lambda b, l: (l, 0, 0)),   # layer bias
            ],
            out_specs=pl.BlockSpec((block_b, P), lambda b, l: (b, 0)),
            scratch_shapes=[pltpu.VMEM((block_b, P), jnp.float32)],
        ),
        compiler_params=pltpu.CompilerParams(**cp_kwargs),
    )(x_packed, w_stack, b_stack)


# ---------------------------------------------------------------------------
# Parameter packing + module wrapper
# ---------------------------------------------------------------------------
def _pack_complex_stack(params, Dp, dtype):
    """Pack per-layer complex (Wr, Wi, br, bi) into padded real block matrices."""
    L = len(params)
    P = 2 * Dp
    w_stack = jnp.zeros((L, P, P), jnp.float32)
    b_stack = jnp.zeros((L, 1, P), jnp.float32)
    for l, (wr, wi, br, bi) in enumerate(params):
        din, dout = wr.shape
        w_stack = w_stack.at[l, :din, :dout].set(wr)
        w_stack = w_stack.at[l, :din, Dp:Dp + dout].set(wi)
        w_stack = w_stack.at[l, Dp:Dp + din, :dout].set(-wi)
        w_stack = w_stack.at[l, Dp:Dp + din, Dp:Dp + dout].set(wr)
        b_stack = b_stack.at[l, 0, :dout].set(br[0])
        b_stack = b_stack.at[l, 0, Dp:Dp + dout].set(bi[0])
    return w_stack.astype(dtype), b_stack


class DeepMLPPallas:
    """JAX/Pallas port of khresmoi.lkis.DeepMLP (complex=True), fused forward."""

    def __init__(self, input_dim, output_dim, hidden_mults=3, key=None,
                 param_dtype=jnp.float32):
        if isinstance(hidden_mults, int):
            hidden_mults = [hidden_mults]
        if key is None:
            key = jax.random.PRNGKey(0)

        self.input_dim = input_dim
        self.output_dim = output_dim

        dims = [input_dim]
        for m in hidden_mults:
            dims.append(int(dims[-1] * m))
        dims.append(output_dim)
        self.dims = dims

        # Deterministic init (torch-Linear-style uniform +-1/sqrt(fan_in)),
        # separate real/imag planes for complex64 weights. Kept in f32 for the
        # pure-JAX reference; packed stack may be stored in bf16.
        self.params = []
        for din, dout in zip(dims[:-1], dims[1:]):
            key, kw_r, kw_i, kb_r, kb_i = jax.random.split(key, 5)
            bound = 1.0 / jnp.sqrt(jnp.float32(din))
            wr = jax.random.uniform(kw_r, (din, dout), jnp.float32, -bound, bound)
            wi = jax.random.uniform(kw_i, (din, dout), jnp.float32, -bound, bound)
            br = jax.random.uniform(kb_r, (1, dout), jnp.float32, -bound, bound)
            bi = jax.random.uniform(kb_i, (1, dout), jnp.float32, -bound, bound)
            self.params.append((wr, wi, br, bi))

        self.num_layers = len(self.params)
        self.Dp = _round_up(max(dims), 128)     # lane-dense half-width
        self.P = 2 * self.Dp                    # packed [real | imag] width
        self.w_stack, self.b_stack = _pack_complex_stack(self.params, self.Dp,
                                                         param_dtype)

    def __call__(self, xr, xi):
        """xr, xi: (batch, input_dim) float32 real/imag planes."""
        B, din = xr.shape
        block_b = 128 if B >= 128 else _round_up(max(B, 8), 8)
        Bp = _round_up(B, block_b)

        x = jnp.zeros((Bp, self.P), jnp.float32)
        x = x.at[:B, :din].set(xr.astype(jnp.float32))
        x = x.at[:B, self.Dp:self.Dp + din].set(xi.astype(jnp.float32))

        out = fused_deep_mlp_pallas(x, self.w_stack, self.b_stack,
                                    num_layers=self.num_layers, block_b=block_b)

        dout = self.output_dim
        return out[:B, :dout], out[:B, self.Dp:self.Dp + dout]


# ---------------------------------------------------------------------------
# Pure-JAX reference (same real/imag decomposition) for validation
# ---------------------------------------------------------------------------
def _reference_forward(model, xr, xi):
    hp = jax.lax.Precision.HIGHEST
    n_layers = len(model.params)
    for idx, (wr, wi, br, bi) in enumerate(model.params):
        yr = (jnp.dot(xr, wr, precision=hp) - jnp.dot(xi, wi, precision=hp)) + br
        yi = (jnp.dot(xr, wi, precision=hp) + jnp.dot(xi, wr, precision=hp)) + bi
        if idx < n_layers - 1:
            yr = _gelu_tanh(yr)
            yi = _gelu_tanh(yi)
        xr, xi = yr, yi
    return xr, xi


if __name__ == "__main__":
    batch = 4
    input_dim = 8
    output_dim = 8
    hidden_mults = 3  # -> hidden dim 24, 2 complex Linear layers

    key = jax.random.PRNGKey(0)
    key, kx_r, kx_i, kparams = jax.random.split(key, 4)
    xr = jax.random.normal(kx_r, (batch, input_dim), jnp.float32)
    xi = jax.random.normal(kx_i, (batch, input_dim), jnp.float32)

    # f32 model (bit-accurate vs reference)
    model = DeepMLPPallas(input_dim, output_dim, hidden_mults, key=kparams)
    out_r, out_i = model(xr, xi)
    out_r = jax.block_until_ready(out_r)
    out_i = jax.block_until_ready(out_i)

    ref_r, ref_i = _reference_forward(model, xr, xi)
    assert jnp.allclose(out_r, ref_r, atol=1e-4, rtol=1e-4), "real part mismatch"
    assert jnp.allclose(out_i, ref_i, atol=1e-4, rtol=1e-4), "imag part mismatch"

    # Reassemble complex64 output (matches torch forward returning complex64).
    out_complex = jax.lax.complex(out_r, out_i)
    jax.block_until_ready(out_complex)

    # bf16 MXU path (v6e/v7x perf feedback): bf16 weights/MXU inputs,
    # f32 accumulation and f32 GELU.  Smoke-run only (precision differs).
    model_bf16 = DeepMLPPallas(input_dim, output_dim, hidden_mults,
                               key=jax.random.PRNGKey(1),
                               param_dtype=jnp.bfloat16)
    bf_r, bf_i = model_bf16(xr, xi)
    jax.block_until_ready(bf_r)
    jax.block_until_ready(bf_i)

    print("KERNEL_OK")
</pallas_src>

<mosaic_0001>
module attributes {stable_mosaic.version = 11 : i64} {
  func.func @_fused_mlp_kernel(%arg0: i32, %arg1: i32, %arg2: memref<8x256xf32, #tpu.memory_space<vmem>>, %arg3: memref<1x256x256xf32, #tpu.memory_space<vmem>>, %arg4: memref<1x1x256xf32, #tpu.memory_space<vmem>>, %arg5: memref<8x256xf32, #tpu.memory_space<vmem>>, %arg6: memref<8x256xf32, #tpu.memory_space<vmem>>) attributes {dimension_semantics = [#tpu.dimension_semantics<parallel>, #tpu.dimension_semantics<arbitrary>], iteration_bounds = array<i64: 1, 2>, scalar_prefetch = 0 : i64, scratch_operands = 1 : i64, tpu.core_type = #tpu.core_type<tc>, window_params = [{transform_indices = @transform_0, window_bounds = array<i64: 8, 256>}, {transform_indices = @transform_1, window_bounds = array<i64: 1, 256, 256>}, {transform_indices = @transform_2, window_bounds = array<i64: 1, 1, 256>}, {transform_indices = @transform_3, window_bounds = array<i64: 8, 256>}]} {
    %c0_i32 = arith.constant 0 : i32
    %0 = arith.cmpi eq, %arg1, %c0_i32 : i32
    %1 = arith.extui %0 : i1 to i32
    %c0_i32_0 = arith.constant 0 : i32
    %2 = arith.cmpi ne, %1, %c0_i32_0 : i32
    scf.if %2 {
      %c0_11 = arith.constant 0 : index
      %c0_12 = arith.constant 0 : index
      %17 = vector.load %arg2[%c0_11, %c0_12] : memref<8x256xf32, #tpu.memory_space<vmem>>, vector<8x256xf32>
      %c0_13 = arith.constant 0 : index
      %c0_14 = arith.constant 0 : index
      %18 = vector.load %arg6[%c0_13, %c0_14] : memref<8x256xf32, #tpu.memory_space<vmem>>, vector<8x256xf32>
      tpu.vector_store %arg6[%c0_13, %c0_14], %17 {strides = array<i32>} : memref<8x256xf32, #tpu.memory_space<vmem>>, vector<8x256xf32>,
    } else {
    }
    %c0 = arith.constant 0 : index
    %c0_1 = arith.constant 0 : index
    %3 = vector.load %arg6[%c0, %c0_1] : memref<8x256xf32, #tpu.memory_space<vmem>>, vector<8x256xf32>
    %c0_2 = arith.constant 0 : index
    %c0_3 = arith.constant 0 : index
    %c0_4 = arith.constant 0 : index
    %4 = vector.load %arg3[%c0_2, %c0_3, %c0_4] : memref<1x256x256xf32, #tpu.memory_space<vmem>>, vector<1x256x256xf32>
    %5 = vector.shape_cast %4 : vector<1x256x256xf32> to vector<256x256xf32>
    %cst = arith.constant dense<0.000000e+00> : vector<8x256xf32>
    %6 = tpu.matmul %3, %5, %cst {dimension_numbers = #tpu.dot_dimension_numbers<[1], [0], [0], [1], [0, 0, 1, 1], [], []>} : vector<8x256xf32>, vector<256x256xf32>, vector<8x256xf32> -> vector<8x256xf32>
    %c0_5 = arith.constant 0 : index
    %c0_6 = arith.constant 0 : index
    %c0_7 = arith.constant 0 : index
    %7 = vector.load %arg4[%c0_5, %c0_6, %c0_7] : memref<1x1x256xf32, #tpu.memory_space<vmem>>, vector<1x1x256xf32>
    %8 = vector.shape_cast %7 : vector<1x1x256xf32> to vector<1x256xf32>
    %9 = vector.broadcast %8 : vector<1x256xf32> to vector<8x256xf32>
    %10 = arith.addf %6, %9 : vector<8x256xf32>
    %c1_i32 = arith.constant 1 : i32
    %11 = arith.cmpi slt, %arg1, %c1_i32 : i32
    %12 = arith.extui %11 : i1 to i32
    %c0_i32_8 = arith.constant 0 : i32
    %13 = arith.cmpi ne, %12, %c0_i32_8 : i32
    scf.if %13 {
      %cst_11 = arith.constant 5.000000e-01 : f32
      %17 = vector.broadcast %cst_11 : f32 to vector<8x256xf32>
      %18 = arith.mulf %17, %10 : vector<8x256xf32>
      %cst_12 = arith.constant 4.471500e-02 : f32
      %19 = vector.broadcast %cst_12 : f32 to vector<8x256xf32>
      %20 = arith.mulf %19, %10 : vector<8x256xf32>
      %21 = arith.mulf %20, %10 : vector<8x256xf32>
      %22 = arith.mulf %21, %10 : vector<8x256xf32>
      %23 = arith.addf %10, %22 : vector<8x256xf32>
      %cst_13 = arith.constant 0.797884583 : f32
      %24 = vector.broadcast %cst_13 : f32 to vector<8x256xf32>
      %25 = arith.mulf %24, %23 : vector<8x256xf32>
      %26 = math.tanh %25 : vector<8x256xf32>
      %cst_14 = arith.constant 1.000000e+00 : f32
      %27 = vector.broadcast %cst_14 : f32 to vector<8x256xf32>
      %28 = arith.addf %27, %26 : vector<8x256xf32>
      %29 = arith.mulf %18, %28 : vector<8x256xf32>
      %c0_15 = arith.constant 0 : index
      %c0_16 = arith.constant 0 : index
      %30 = vector.load %arg6[%c0_15, %c0_16] : memref<8x256xf32, #tpu.memory_space<vmem>>, vector<8x256xf32>
      tpu.vector_store %arg6[%c0_15, %c0_16], %29 {strides = array<i32>} : memref<8x256xf32, #tpu.memory_space<vmem>>, vector<8x256xf32>,
    } else {
    }
    %c1_i32_9 = arith.constant 1 : i32
    %14 = arith.cmpi eq, %arg1, %c1_i32_9 : i32
    %15 = arith.extui %14 : i1 to i32
    %c0_i32_10 = arith.constant 0 : i32
    %16 = arith.cmpi ne, %15, %c0_i32_10 : i32
    scf.if %16 {
      %c0_11 = arith.constant 0 : index
      %c0_12 = arith.constant 0 : index
      %17 = vector.load %arg5[%c0_11, %c0_12] : memref<8x256xf32, #tpu.memory_space<vmem>>, vector<8x256xf32>
      tpu.vector_store %arg5[%c0_11, %c0_12], %10 {strides = array<i32>} : memref<8x256xf32, #tpu.memory_space<vmem>>, vector<8x256xf32>,
    } else {
    }
    return
  }
  func.func @transform_0(%arg0: i32, %arg1: i32) -> (i32, i32) {
    %c0_i32 = arith.constant 0 : i32
    %c0_i32_0 = arith.constant 0 : i32
    return %arg0, %c0_i32 : i32, i32
  }
  func.func @transform_1(%arg0: i32, %arg1: i32) -> (i32, i32, i32) {
    %c0_i32 = arith.constant 0 : i32
    %c0_i32_0 = arith.constant 0 : i32
    %c0_i32_1 = arith.constant 0 : i32
    return %arg1, %c0_i32, %c0_i32_0 : i32, i32, i32
  }
  func.func @transform_2(%arg0: i32, %arg1: i32) -> (i32, i32, i32) {
    %c0_i32 = arith.constant 0 : i32
    %c0_i32_0 = arith.constant 0 : i32
    %c0_i32_1 = arith.constant 0 : i32
    return %arg1, %c0_i32, %c0_i32_0 : i32, i32, i32
  }
  func.func @transform_3(%arg0: i32, %arg1: i32) -> (i32, i32) {
    %c0_i32 = arith.constant 0 : i32
    %c0_i32_0 = arith.constant 0 : i32
    return %arg0, %c0_i32 : i32, i32
  }
}

</mosaic_0001>

<llo_original>
// kernel: tpu_custom_call.1
$region0: #{tpu_custom_call.1}
  #allocation0 [shape = 'u32[]', space=smem, size = 0x4, offset = 0x4, fixed_abs, tag = 'smem constant byte address 0x4 - core index']
  #allocation1 [shape = 'u32[144,128]{1,0:T(1,128)}', space=vmem, size = 0x12000, scoped, tag = 'internal scratch']
  #allocation2 [shape = 'f32[8,256]{1,0:T(8,128)}', space=vmem, size = 0x2000, scoped, tag = 'scratch operand']
  %s0 = inlined_call_operand.hbm [shape: f32[8,256], index: 0, kind: input, shape index: {}]
  %s1 = inlined_call_operand.hbm [shape: f32[2,256,256], index: 1, kind: input, shape index: {}]
  %s2 = inlined_call_operand.vmem [shape: f32[2,1,256], index: 2, kind: input, shape index: {}]
  %s3 = inlined_call_operand.hbm [shape: f32[8,256], index: 3, kind: output, shape index: {}]
  %s4 = sld [smem:[#allocation0]]
  $region65: #{tpu_custom_call.1} parent=0
    _
  %s6 = ssub.s32 1, %s4
  %s7 = scalar_select 0, %s6, %s4
  $region1: #{tpu_custom_call.1} parent=0
    #allocation3 [shape = 'u8[8192]{0}', space=vmem, size = 0x2000, scoped, tag = 'input window, operand 0, single buffered']
    #allocation4 [shape = 's32[2]{0}', space=sflag, size = 0x8, scoped, tag = 'scoped memory for tpu_custom_call.1']
    #allocation5 [shape = 's32[2]{0}', space=sflag, size = 0x8, scoped, tag = 'scoped memory for tpu_custom_call.1']
    #allocation6 [shape = 'u8[524288]{0}', space=vmem, size = 0x80000, scoped, tag = 'input window, operand 1']
    #allocation7 [shape = 's32[2]{0}', space=sflag, size = 0x8, scoped, tag = 'scoped memory for tpu_custom_call.1']
    #allocation8 [shape = 'u8[8192]{0}', space=vmem, size = 0x2000, scoped, tag = 'output window, operand 0, single buffered']
    %8 = vsyncpa [#allocation4], 0
    %9 = vsyncpa [#allocation7], 0
    %s10 = scalar_lea.sflag [#allocation7], 1
    %11 = vsyncpa %s10, 0
    %12 = vsyncpa [#allocation5], 0
    loop: start=0, step=1, limit=4
    $region2: #{tpu_custom_call.1} parent=1 // loop_pre_header
      _
    $region3: #{tpu_custom_call.1} parent=1 // loop_header
      %s14 = sphi 0, %s18
      %p15 = scmp.ge.s32.totalorder %s14, 4
      %s21 = sphi 0, %s33
      %s22 = sphi 0, %s29
      %s23 = sphi 0, %s21
      %s24 = sphi 0, %s22
      %s25 = sphi 0, %s23
      %s26 = sphi 0, %s24
      %s36 = sphi 0, %s38
      %s39 = sphi 0, %s36
      %s40 = sphi 0, %s39
      %s56 = sphi 0, %s40
      %s62 = sphi 0, %s64
      %s65 = sphi 0, %s62
      %s66 = sphi 0, %s65
      %s82 = sphi 0, %s66
      %s88 = sphi 0, %s90
      %s91 = sphi 0, %s88
      %s92 = sphi 0, %s91
      %s108 = sphi 0, %s92
      %s114 = sphi 0, %s116
      %s117 = sphi 0, %s114
      %s118 = sphi 0, %s117
      %s134 = sphi 0, %s118
    $region4: #{tpu_custom_call.1} parent=1 // loop_header_branch
      %17 = sbr.rel (%p15) target = $region8
    $region5: #{tpu_custom_call.1} parent=1 // loop_body
      %s19 = ssub.s32 %s14, 1
      %s20 = ssub.s32 %s14, 2
      %s27 = sadd.s32 1, %s22
      %p28 = scmp.ge.s32.totalorder %s27, 2
      %s29 = scalar_select %p28, 0, %s27
      %s30 = sadd.s32 1, %s21
      %s31 = scalar_select %p28, %s30, %s21
      %p32 = scmp.ge.s32.totalorder %s31, 1
      %s33 = scalar_select %p32, 0, %s31
      %s34 = ssub.s32 %s21, %s33
      %p35 = scmp.eq.s32.totalorder %s34, 0
      %s37 = sadd.s32 %s36, 1
      %s38 = scalar_select %p35, %s36, %s37
      %p41 = pneg %p35
      %p42 = scmp.eq.s32.totalorder %s14, 1
      %p43 = por %p41, %p42
      %p44 = scmp.ne.s32.totalorder %s36, %s39
      %p45 = scmp.eq.s32.totalorder %s14, 0
      %p46 = por %p44, %p45
      %p47 = scmp.ne.s32.totalorder %s36, %s39
      %p48 = scmp.eq.s32.totalorder %s19, 1
      %p49 = por %p47, %p48
      %p50 = scmp.ne.s32.totalorder %s39, %s40
      %p51 = scmp.eq.s32.totalorder %s19, 0
      %p52 = por %p50, %p51
      %p53 = scmp.ne.s32.totalorder %s39, %s40
      %p54 = scmp.eq.s32.totalorder %s20, 1
      %p55 = por %p53, %p54
      %p57 = scmp.ne.s32.totalorder %s40, %s56
      %p58 = scmp.eq.s32.totalorder %s20, 0
      %p59 = por %p57, %p58
      %s60 = ssub.s32 %s22, %s29
      %p61 = scmp.eq.s32.totalorder %s60, 0
      %s63 = sadd.s32 %s62, 1
      %s64 = scalar_select %p61, %s62, %s63
      %p67 = pneg %p61
      %p68 = scmp.eq.s32.totalorder %s14, 1
      %p69 = por %p67, %p68
      %p70 = scmp.ne.s32.totalorder %s62, %s65
      %p71 = scmp.eq.s32.totalorder %s14, 0
      %p72 = por %p70, %p71
      %p73 = scmp.ne.s32.totalorder %s62, %s65
      %p74 = scmp.eq.s32.totalorder %s19, 1
      %p75 = por %p73, %p74
      %p76 = scmp.ne.s32.totalorder %s65, %s66
      %p77 = scmp.eq.s32.totalorder %s19, 0
      %p78 = por %p76, %p77
      %p79 = scmp.ne.s32.totalorder %s65, %s66
      %p80 = scmp.eq.s32.totalorder %s20, 1
      %p81 = por %p79, %p80
      %p83 = scmp.ne.s32.totalorder %s66, %s82
      %p84 = scmp.eq.s32.totalorder %s20, 0
      %p85 = por %p83, %p84
      %s86 = ssub.s32 %s22, %s29
      %p87 = scmp.eq.s32.totalorder %s86, 0
      %s89 = sadd.s32 %s88, 1
      %s90 = scalar_select %p87, %s88, %s89
      %p93 = pneg %p87
      %p94 = scmp.eq.s32.totalorder %s14, 1
      %p95 = por %p93, %p94
      %p96 = scmp.ne.s32.totalorder %s88, %s91
      %p97 = scmp.eq.s32.totalorder %s14, 0
      %p98 = por %p96, %p97
      %p99 = scmp.ne.s32.totalorder %s88, %s91
      %p100 = scmp.eq.s32.totalorder %s19, 1
      %p101 = por %p99, %p100
      %p102 = scmp.ne.s32.totalorder %s91, %s92
      %p103 = scmp.eq.s32.totalorder %s19, 0
      %p104 = por %p102, %p103
      %p105 = scmp.ne.s32.totalorder %s91, %s92
      %p106 = scmp.eq.s32.totalorder %s20, 1
      %p107 = por %p105, %p106
      %p109 = scmp.ne.s32.totalorder %s92, %s108
      %p110 = scmp.eq.s32.totalorder %s20, 0
      %p111 = por %p109, %p110
      %s112 = ssub.s32 %s21, %s33
      %p113 = scmp.eq.s32.totalorder %s112, 0
      %s115 = sadd.s32 %s114, 1
      %s116 = scalar_select %p113, %s114, %s115
      %p119 = pneg %p113
      %p120 = scmp.eq.s32.totalorder %s14, 1
      %p121 = por %p119, %p120
      %p122 = scmp.ne.s32.totalorder %s114, %s117
      %p123 = scmp.eq.s32.totalorder %s14, 0
      %p124 = por %p122, %p123
      %p125 = scmp.ne.s32.totalorder %s114, %s117
      %p126 = scmp.eq.s32.totalorder %s19, 1
      %p127 = por %p125, %p126
      %p128 = scmp.ne.s32.totalorder %s117, %s118
      %p129 = scmp.eq.s32.totalorder %s19, 0
      %p130 = por %p128, %p129
      %p131 = scmp.ne.s32.totalorder %s117, %s118
      %p132 = scmp.eq.s32.totalorder %s20, 1
      %p133 = por %p131, %p132
      %p135 = scmp.ne.s32.totalorder %s118, %s134
      %p136 = scmp.eq.s32.totalorder %s20, 0
      %p137 = por %p135, %p136
      %p138 = scmp.le.s32.totalorder 1, %s14
      %p139 = scmp.lt.s32.totalorder %s14, 3
      %p140 = pnand %p138, %p139
      %p141 = pneg %p140
      // Predicated region
      $region9: #{tpu_custom_call.1} parent=5 // pred_check
        _
      $region10: #{tpu_custom_call.1} parent=5 // pred_check_branch
        %143 = sbr.rel (%p140) target = $region12
      $region11: #{tpu_custom_call.1} parent=5 // pred_region
        %s144 = ssub.s32 %s14, 1
        // Predicated region
        $region13: #{tpu_custom_call.1} parent=11 // pred_check
          %p145 = pneg %p52
        $region14: #{tpu_custom_call.1} parent=11 // pred_check_branch
          %147 = sbr.rel (%p145) target = $region16
        $region15: #{tpu_custom_call.1} parent=11 // pred_region
          %s149 = ssub.s32 256, 256
          %150 = vsyncadd [#allocation4], %s149
          %s151 = smul.addr %s23, 2
          %s152 = smul.addr %s151, 128
          %s153 = scalar_lea.hbm %s0, %s152
          %s155 = sshll.u32 [#allocation3], 4
          %s156 = int_to_ptr.vmem [resolvable:$true] %s155
          %158 = dma.hbm_to_vmem [thread:$0]  %s153, 256, %s156, [#allocation4]
        $region16: #{tpu_custom_call.1} parent=11 // pred_fallthru
          _
      $region12: #{tpu_custom_call.1} parent=5 // pred_fallthru
        _
      %p159 = scmp.lt.s32.totalorder %s14, 2
      // Predicated region
      $region17: #{tpu_custom_call.1} parent=5 // pred_check
        %p160 = pneg %p159
      $region18: #{tpu_custom_call.1} parent=5 // pred_check_branch
        %162 = sbr.rel (%p160) target = $region20
      $region19: #{tpu_custom_call.1} parent=5 // pred_region
        // Predicated region
        $region21: #{tpu_custom_call.1} parent=19 // pred_check
          %p163 = pneg %p72
        $region22: #{tpu_custom_call.1} parent=19 // pred_check_branch
          %165 = sbr.rel (%p163) target = $region24
        $region23: #{tpu_custom_call.1} parent=19 // pred_region
          %s166 = sand.u32 %s62, 1
          %s167 = scalar_lea.sflag [#allocation7], %s166
          %s168 = sand.u32 %s62, 1
          %s169 = smul.addr %s168, 512
          %s170 = scalar_lea.vmem [#allocation6], %s169
          %s172 = ssub.s32 8192, 8192
          %173 = vsyncadd %s167, %s172
          %s174 = smul.addr %s22, 64
          %s175 = smul.addr %s174, 128
          %s176 = scalar_lea.hbm %s1, %s175
          %s177 = sshll.u32 %s170, 4
          %s178 = int_to_ptr.vmem [resolvable:$true] %s177
          %183 = dma.hbm_to_vmem [thread:$0]  %s176, 8192, %s178, %s167, 256, 256, 16
        $region24: #{tpu_custom_call.1} parent=19 // pred_fallthru
          _
        // Predicated region
        $region25: #{tpu_custom_call.1} parent=19 // pred_check
          %p184 = pneg %p98
        $region26: #{tpu_custom_call.1} parent=19 // pred_check_branch
          %186 = sbr.rel (%p184) target = $region28
        $region27: #{tpu_custom_call.1} parent=19 // pred_region
          %p187 = scmp.lt.s32.totalorder %s22, 1
          %s188 = scalar_select %p187, %s22, 1
          %s189 = smul.addr %s188, 2
          %s190 = scalar_lea.vmem %s2, %s189
        $region28: #{tpu_custom_call.1} parent=19 // pred_fallthru
          _
      $region20: #{tpu_custom_call.1} parent=5 // pred_fallthru
        _
      %p191 = scmp.le.s32.totalorder 1, %s14
      %p192 = scmp.lt.s32.totalorder %s14, 3
      %p193 = pnand %p191, %p192
      %p194 = pneg %p193
      // Predicated region
      $region29: #{tpu_custom_call.1} parent=5 // pred_check
        _
      $region30: #{tpu_custom_call.1} parent=5 // pred_check_branch
        %196 = sbr.rel (%p193) target = $region32
      $region31: #{tpu_custom_call.1} parent=5 // pred_region
        %s197 = ssub.s32 %s14, 1
        // Predicated region
        $region33: #{tpu_custom_call.1} parent=31 // pred_check
          %p198 = pneg %p52
        $region34: #{tpu_custom_call.1} parent=31 // pred_check_branch
          %200 = sbr.rel (%p198) target = $region36
        $region35: #{tpu_custom_call.1} parent=31 // pred_region
          %201 = dma.done [#allocation4], 256
        $region36: #{tpu_custom_call.1} parent=31 // pred_fallthru
          _
        %s202 = sand.u32 %s65, 1
        %s203 = scalar_lea.sflag [#allocation7], %s202
        %s204 = sand.u32 %s65, 1
        %s205 = smul.addr %s204, 512
        %s206 = scalar_lea.vmem [#allocation6], %s205
        // Predicated region
        $region37: #{tpu_custom_call.1} parent=31 // pred_check
          %p207 = pneg %p78
        $region38: #{tpu_custom_call.1} parent=31 // pred_check_branch
          %209 = sbr.rel (%p207) target = $region40
        $region39: #{tpu_custom_call.1} parent=31 // pred_region
          %210 = dma.done %s203, 8192
        $region40: #{tpu_custom_call.1} parent=31 // pred_fallthru
          _
        %p211 = pneg %p52
        %p212 = pneg %p49
        %s213 = sand.u32 %s65, 1
        %s214 = scalar_lea.sflag [#allocation7], %s213
        %s215 = sand.u32 %s65, 1
        %s216 = smul.addr %s215, 512
        %s217 = scalar_lea.vmem [#allocation6], %s216
        %p218 = pneg %p78
        %p219 = pneg %p75
        %p220 = scmp.lt.s32.totalorder %s24, 1
        %s221 = scalar_select %p220, %s24, 1
        %s222 = smul.addr %s221, 2
        %s223 = scalar_lea.vmem %s2, %s222
        %p224 = pneg %p104
        %p225 = pneg %p101
        %p226 = pneg %p130
        %p227 = pneg %p127
        %p228 = scmp.lt.s32.totalorder %s24, 1
        %s229 = scalar_select %p228, %s24, 1
        %s230 = smul.addr %s229, 2
        %s231 = scalar_lea.vmem %s2, %s230
        %p232 = scmp.eq.s32.totalorder %s24, 0
        // Predicated region
        $region41: #{tpu_custom_call.1} parent=31 // pred_check
          %p233 = pneg %p232
        $region42: #{tpu_custom_call.1} parent=31 // pred_check_branch
          %235 = sbr.rel (%p233) target = $region44
        $region43: #{tpu_custom_call.1} parent=31 // pred_region
          %v236 = vld [vmem:[#allocation3] sm:$0xff]
          %v237 = vld [vmem:[#allocation3 + $0x8] sm:$0xff]
          %238 = vst [vmem:[#allocation2] sm:$0xff] %v236
          %239 = vst [vmem:[#allocation2 + $0x8] sm:$0xff] %v237
        $region44: #{tpu_custom_call.1} parent=31 // pred_fallthru
          _
        %v240 = vld [vmem:[#allocation2] sm:$0xff]
        %v241 = vld [vmem:[#allocation2 + $0x8] sm:$0xff]
        %v242 = vld [vmem:[%s206] sm:$0xff]
        %v243 = vld [vmem:[%s206 + $0x8] sm:$0xff]
        %v244 = vld [vmem:[%s206 + $0x10] sm:$0xff]
        %v245 = vld [vmem:[%s206 + $0x18] sm:$0xff]
        %v246 = vld [vmem:[%s206 + $0x20] sm:$0xff]
        %v247 = vld [vmem:[%s206 + $0x28] sm:$0xff]
        %v248 = vld [vmem:[%s206 + $0x30] sm:$0xff]
        %v249 = vld [vmem:[%s206 + $0x38] sm:$0xff]
        %v250 = vld [vmem:[%s206 + $0x40] sm:$0xff]
        %v251 = vld [vmem:[%s206 + $0x48] sm:$0xff]
        %v252 = vld [vmem:[%s206 + $0x50] sm:$0xff]
        %v253 = vld [vmem:[%s206 + $0x58] sm:$0xff]
        %v254 = vld [vmem:[%s206 + $0x60] sm:$0xff]
        %v255 = vld [vmem:[%s206 + $0x68] sm:$0xff]
        %v256 = vld [vmem:[%s206 + $0x70] sm:$0xff]
        %v257 = vld [vmem:[%s206 + $0x78] sm:$0xff]
        %v258 = vld [vmem:[%s206 + $0x80] sm:$0xff]
        %v259 = vld [vmem:[%s206 + $0x88] sm:$0xff]
        %v260 = vld [vmem:[%s206 + $0x90] sm:$0xff]
        %v261 = vld [vmem:[%s206 + $0x98] sm:$0xff]
        %v262 = vld [vmem:[%s206 + $0xa0] sm:$0xff]
        %v263 = vld [vmem:[%s206 + $0xa8] sm:$0xff]
        %v264 = vld [vmem:[%s206 + $0xb0] sm:$0xff]
        %v265 = vld [vmem:[%s206 + $0xb8] sm:$0xff]
        %v266 = vld [vmem:[%s206 + $0xc0] sm:$0xff]
        %v267 = vld [vmem:[%s206 + $0xc8] sm:$0xff]
        %v268 = vld [vmem:[%s206 + $0xd0] sm:$0xff]
        %v269 = vld [vmem:[%s206 + $0xd8] sm:$0xff]
        %v270 = vld [vmem:[%s206 + $0xe0] sm:$0xff]
        %v271 = vld [vmem:[%s206 + $0xe8] sm:$0xff]
        %v272 = vld [vmem:[%s206 + $0xf0] sm:$0xff]
        %v273 = vld [vmem:[%s206 + $0xf8] sm:$0xff]
        %v274 = vld [vmem:[%s206 + $0x100] sm:$0xff]
        %v275 = vld [vmem:[%s206 + $0x108] sm:$0xff]
        %v276 = vld [vmem:[%s206 + $0x110] sm:$0xff]
        %v277 = vld [vmem:[%s206 + $0x118] sm:$0xff]
        %v278 = vld [vmem:[%s206 + $0x120] sm:$0xff]
        %v279 = vld [vmem:[%s206 + $0x128] sm:$0xff]
        %v280 = vld [vmem:[%s206 + $0x130] sm:$0xff]
        %v281 = vld [vmem:[%s206 + $0x138] sm:$0xff]
        %v282 = vld [vmem:[%s206 + $0x140] sm:$0xff]
        %v283 = vld [vmem:[%s206 + $0x148] sm:$0xff]
        %v284 = vld [vmem:[%s206 + $0x150] sm:$0xff]
        %v285 = vld [vmem:[%s206 + $0x158] sm:$0xff]
        %v286 = vld [vmem:[%s206 + $0x160] sm:$0xff]
        %v287 = vld [vmem:[%s206 + $0x168] sm:$0xff]
        %v288 = vld [vmem:[%s206 + $0x170] sm:$0xff]
        %v289 = vld [vmem:[%s206 + $0x178] sm:$0xff]
        %v290 = vld [vmem:[%s206 + $0x180] sm:$0xff]
        %v291 = vld [vmem:[%s206 + $0x188] sm:$0xff]
        %v292 = vld [vmem:[%s206 + $0x190] sm:$0xff]
        %v293 = vld [vmem:[%s206 + $0x198] sm:$0xff]
        %v294 = vld [vmem:[%s206 + $0x1a0] sm:$0xff]
        %v295 = vld [vmem:[%s206 + $0x1a8] sm:$0xff]
        %v296 = vld [vmem:[%s206 + $0x1b0] sm:$0xff]
        %v297 = vld [vmem:[%s206 + $0x1b8] sm:$0xff]
        %v298 = vld [vmem:[%s206 + $0x1c0] sm:$0xff]
        %v299 = vld [vmem:[%s206 + $0x1c8] sm:$0xff]
        %v300 = vld [vmem:[%s206 + $0x1d0] sm:$0xff]
        %v301 = vld [vmem:[%s206 + $0x1d8] sm:$0xff]
        %v302 = vld [vmem:[%s206 + $0x1e0] sm:$0xff]
        %v303 = vld [vmem:[%s206 + $0x1e8] sm:$0xff]
        %v304 = vld [vmem:[%s206 + $0x1f0] sm:$0xff]
        %v305 = vld [vmem:[%s206 + $0x1f8] sm:$0xff]
        %v306 = vld [vmem:[%s231] sm:$0x3]
        %v308 = vlaneseq
        %v309 = vshrl.u32 %v308, 7
        %v310 = vsub.s32 0, %v309
        %v311 = vrot.slane %v306, %v310
        %v312 = vlaneseq
        %v313 = vshrl.u32 %v312, 7
        %v314 = vsub.s32 1, %v313
        %v315 = vrot.slane %v306, %v314
        %318 = vmatprep.subr.mxu0 %v243
        %319 = vmatpush1.msra.mxu0 %v242
        %320 = vmatprep.subr.mxu0 %v245
        %321 = vmatpush1.msra.mxu0 %v244
        %322 = vmatprep.subr.mxu0 %v247
        %323 = vmatpush1.msra.mxu0 %v246
        %324 = vmatprep.subr.mxu0 %v249
        %325 = vmatpush1.msra.mxu0 %v248
        %326 = vmatprep.subr.mxu0 %v251
        %327 = vmatpush1.msra.mxu0 %v250
        %328 = vmatprep.subr.mxu0 %v253
        %329 = vmatpush1.msra.mxu0 %v252
        %330 = vmatprep.subr.mxu0 %v255
        %331 = vmatpush1.msra.mxu0 %v254
        %332 = vmatprep.subr.mxu0 %v257
        %333 = vmatpush1.msra.mxu0 %v256
        %334 = vmatprep.subr.mxu0 %v259
        %335 = vmatpush1.msra.mxu0 %v258
        %336 = vmatprep.subr.mxu0 %v261
        %337 = vmatpush1.msra.mxu0 %v260
        %338 = vmatprep.subr.mxu0 %v263
        %339 = vmatpush1.msra.mxu0 %v262
        %340 = vmatprep.subr.mxu0 %v265
        %341 = vmatpush1.msra.mxu0 %v264
        %342 = vmatprep.subr.mxu0 %v267
        %343 = vmatpush1.msra.mxu0 %v266
        %344 = vmatprep.subr.mxu0 %v269
        %345 = vmatpush1.msra.mxu0 %v268
        %346 = vmatprep.subr.mxu0 %v271
        %347 = vmatpush1.msra.mxu0 %v270
        %348 = vmatprep.subr.mxu0 %v273
        %349 = vmatpush1.msra.mxu0 %v272
        %350 = vmatprep.subr.mxu0 %v275
        %351 = vmatpush1.msra.mxu0 %v274
        %352 = vmatprep.subr.mxu0 %v277
        %353 = vmatpush1.msra.mxu0 %v276
        %354 = vmatprep.subr.mxu0 %v279
        %355 = vmatpush1.msra.mxu0 %v278
        %356 = vmatprep.subr.mxu0 %v281
        %357 = vmatpush1.msra.mxu0 %v280
        %358 = vmatprep.subr.mxu0 %v283
        %359 = vmatpush1.msra.mxu0 %v282
        %360 = vmatprep.subr.mxu0 %v285
        %361 = vmatpush1.msra.mxu0 %v284
        %362 = vmatprep.subr.mxu0 %v287
        %363 = vmatpush1.msra.mxu0 %v286
        %364 = vmatprep.subr.mxu0 %v289
        %365 = vmatpush1.msra.mxu0 %v288
        %366 = vmatprep.subr.mxu0 %v291
        %367 = vmatpush1.msra.mxu0 %v290
        %368 = vmatprep.subr.mxu0 %v293
        %369 = vmatpush1.msra.mxu0 %v292
        %370 = vmatprep.subr.mxu0 %v295
        %371 = vmatpush1.msra.mxu0 %v294
        %372 = vmatprep.subr.mxu0 %v297
        %373 = vmatpush1.msra.mxu0 %v296
        %374 = vmatprep.subr.mxu0 %v299
        %375 = vmatpush1.msra.mxu0 %v298
        %376 = vmatprep.subr.mxu0 %v301
        %377 = vmatpush1.msra.mxu0 %v300
        %378 = vmatprep.subr.mxu0 %v303
        %379 = vmatpush1.msra.mxu0 %v302
        %380 = vmatprep.subr.mxu0 %v305
        %381 = vmatpush1.msra.mxu0 %v304
        %382 = vmatprep.mubr.f32.mxu0 %v241
        %383 = vmatmul.mubr.f32.gmra.mrb[0].mxu0 %v240
        %v384 = vpop.f32.mrb[0].mxu0
        %v385 = vadd.f32 %v311, %v384
        %v386 = vpop.f32.mrb[0].mxu0
        %v387 = vadd.f32 %v315, %v386
        %388 = vdwg.mxu0
        %p389 = scmp.lt.s32.totalorder %s24, 1
        // Predicated region
        $region45: #{tpu_custom_call.1} parent=31 // pred_check
          %p390 = pneg %p389
        $region46: #{tpu_custom_call.1} parent=31 // pred_check_branch
          %392 = sbr.rel (%p390) target = $region48
        $region47: #{tpu_custom_call.1} parent=31 // pred_region
          %v393 = vmul.f32 %v385, 0.5
          %v394 = vmul.f32 %v387, 0.5
          %v395 = vmul.f32 %v385, 0.044715
          %v396 = vmul.f32 %v387, 0.044715
          %v397 = vmul.f32 %v395, %v385
          %v398 = vmul.f32 %v396, %v387
          %v399 = vmul.f32 %v397, %v385
          %v400 = vmul.f32 %v398, %v387
          %v401 = vadd.f32 %v385, %v399
          %v402 = vadd.f32 %v387, %v400
          %v403 = vmul.f32 %v401, 0.7978846
          %v404 = vmul.f32 %v402, 0.7978846
          %v405 = vtanh.pop %v403
          %v406 = vtanh.pop %v404
          %v407 = vadd.f32 %v405, 1.0
          %v408 = vadd.f32 %v406, 1.0
          %v409 = vmul.f32 %v393, %v407
          %v410 = vmul.f32 %v394, %v408
          %411 = vst [vmem:[#allocation2] sm:$0xff] %v409
          %412 = vst [vmem:[#allocation2 + $0x8] sm:$0xff] %v410
        $region48: #{tpu_custom_call.1} parent=31 // pred_fallthru
          _
        %p413 = scmp.eq.s32.totalorder %s24, 1
        // Predicated region
        $region49: #{tpu_custom_call.1} parent=31 // pred_check
          %p414 = pneg %p413
        $region50: #{tpu_custom_call.1} parent=31 // pred_check_branch
          %416 = sbr.rel (%p414) target = $region52
        $region51: #{tpu_custom_call.1} parent=31 // pred_region
          %417 = vst [vmem:[#allocation8] sm:$0xff] %v385
          %418 = vst [vmem:[#allocation8 + $0x8] sm:$0xff] %v387
        $region52: #{tpu_custom_call.1} parent=31 // pred_fallthru
          _
        // Predicated region
        $region53: #{tpu_custom_call.1} parent=31 // pred_check
          %p419 = pneg %p127
        $region54: #{tpu_custom_call.1} parent=31 // pred_check_branch
          %421 = sbr.rel (%p419) target = $region56
        $region55: #{tpu_custom_call.1} parent=31 // pred_region
          %s423 = ssub.s32 256, 256
          %424 = vsyncadd [#allocation5], %s423
          %s425 = smul.addr %s23, 2
          %s426 = smul.addr %s425, 128
          %s427 = scalar_lea.hbm %s3, %s426
          %s429 = sshll.u32 [#allocation8], 4
          %s430 = int_to_ptr.vmem [resolvable:$true] %s429
          %432 = dma.vmem_to_hbm [thread:$0]  %s430, 256, %s427, [#allocation5]
        $region56: #{tpu_custom_call.1} parent=31 // pred_fallthru
          _
        // Predicated region
        $region57: #{tpu_custom_call.1} parent=31 // pred_check
          %p433 = pneg %p127
        $region58: #{tpu_custom_call.1} parent=31 // pred_check_branch
          %435 = sbr.rel (%p433) target = $region60
        $region59: #{tpu_custom_call.1} parent=31 // pred_region
          %436 = dma.done [#allocation5], 256
        $region60: #{tpu_custom_call.1} parent=31 // pred_fallthru
          _
      $region32: #{tpu_custom_call.1} parent=5 // pred_fallthru
        _
      %p437 = scmp.le.s32.totalorder 2, %s14
      // Predicated region
      $region61: #{tpu_custom_call.1} parent=5 // pred_check
        %p438 = pneg %p437
      $region62: #{tpu_custom_call.1} parent=5 // pred_check_branch
        %440 = sbr.rel (%p438) target = $region64
      $region63: #{tpu_custom_call.1} parent=5 // pred_region
        %s441 = ssub.s32 %s14, 2
      $region64: #{tpu_custom_call.1} parent=5 // pred_fallthru
        _
    $region6: #{tpu_custom_call.1} parent=1 // loop_footer
      %s18 = sadd.s32 1, %s14
    $region7: #{tpu_custom_call.1} parent=1 // loop_footer_branch
      %13 = sbr.rel target = $region3
    $region8: #{tpu_custom_call.1} parent=1 // loop_exit
      _
    %442 = vsyncpa [#allocation4], 1
    %s443 = scalar_lea.sflag [#allocation4], 1
    %444 = vsyncpa %s443, 1
    %445 = vsyncpa [#allocation7], 1
    %s446 = scalar_lea.sflag [#allocation7], 1
    %447 = vsyncpa %s446, 1
    %448 = vsyncpa [#allocation5], 1
    %s449 = scalar_lea.sflag [#allocation5], 1
    %450 = vsyncpa %s449, 1

</llo_original>
